<compile_context>
chip_gen: v7x
topology: tpu7x:2x2x1
jax: 0.10.0
libtpu: 0.0.40
codegen_flags: <defaults>
</compile_context>

<pallas_src>
import functools

import jax
import jax.numpy as jnp
from jax.experimental import pallas as pl
from jax.experimental.pallas import tpu as pltpu

_LANE = 128
_MAX_BLOCK_ROWS = 2048   # (2048, 128) f32 = 1 MiB per input per buffer
_NUM_CORES = 2           # leading "parallel" grid axis (v7x megacore; harmless elsewhere)


def _depth_loss_kernel(pred_ref, gt_ref, mask_ref, abs_out_ref, msk_out_ref,
                       *, blocks_per_core, block_rows, n_rows):
    c = pl.program_id(0)   # core / partial-sum index ("parallel")
    k = pl.program_id(1)   # reduction step ("arbitrary")

    # Zero the resident output accumulators at the start of each core's sweep.
    @pl.when(k == 0)
    def _():
        abs_out_ref[...] = jnp.zeros_like(abs_out_ref)
        msk_out_ref[...] = jnp.zeros_like(msk_out_ref)

    # Cast in-kernel (inputs may be bf16 etc.; math & accumulation in f32).
    pred = pred_ref[...].astype(jnp.float32)
    gt = gt_ref[...].astype(jnp.float32)
    m = mask_ref[...].astype(jnp.float32)

    # Row-granular validity mask: rows >= n_rows are either the ragged tail of
    # a partial final block or a clamped duplicate block -> unspecified data.
    # jnp.where (select) keeps any garbage NaN/Inf from propagating.
    block_idx = c * blocks_per_core + k
    row_ids = block_idx * block_rows + jax.lax.broadcasted_iota(
        jnp.int32, (block_rows, _LANE), 0)
    valid = row_ids < n_rows

    # mask_d = (depth_gt > 0); effective mask = mask * mask_d
    m_eff = jnp.where(valid, m * (gt > 0.0).astype(jnp.float32), 0.0)
    diff = jnp.where(valid, pred - gt, 0.0)
    err_abs = jnp.abs(diff * m_eff)

    # Fold (block_rows, 128) -> (8, 128) with sublane-aligned VPU adds; defer
    # the cross-lane reduction + divide to the wrapper (done once).
    abs_part = jnp.sum(err_abs.reshape(block_rows // 8, 8, _LANE), axis=0)
    msk_part = jnp.sum(m_eff.reshape(block_rows // 8, 8, _LANE), axis=0)

    abs_out_ref[...] += abs_part[None]
    msk_out_ref[...] += msk_part[None]


def depth_loss_pallas(depth_pred, depth_gt, mask):
    """Masked L1 depth loss matching the PyTorch DepthLoss.forward (l1)."""
    assert depth_pred.shape == depth_gt.shape == mask.shape
    if mask.dtype == jnp.bool_:
        mask = mask.astype(jnp.float32)   # bool tiles are awkward; tiny cast

    total = int(depth_pred.size)
    granule = 8 * _LANE  # one f32 vreg worth of elements
    padded = ((total + granule - 1) // granule) * granule
    n_rows = padded // _LANE

    def _slab(x):
        x = x.reshape(-1)
        if padded != total:
            # Rare fallback (size not a multiple of 1024): one small copy.
            # Typical depth maps (B*C*H*W multiple of 1024) skip this entirely,
            # so the kernel streams each tensor from HBM exactly once.
            x = jnp.pad(x, (0, padded - total))
        return x.reshape(n_rows, _LANE)

    p2, g2, m2 = _slab(depth_pred), _slab(depth_gt), _slab(mask)

    block_rows = min(_MAX_BLOCK_ROWS, n_rows)          # n_rows % 8 == 0 always
    n_row_blocks = (n_rows + block_rows - 1) // block_rows
    blocks_per_core = (n_row_blocks + _NUM_CORES - 1) // _NUM_CORES

    def in_map(c, k):
        # Clamp so a core with no real work never requests a fully
        # out-of-bounds block; its contribution is killed by the row mask.
        return (jnp.minimum(c * blocks_per_core + k, n_row_blocks - 1), 0)

    kernel = functools.partial(
        _depth_loss_kernel,
        blocks_per_core=blocks_per_core,
        block_rows=block_rows,
        n_rows=n_rows,
    )

    abs_part, msk_part = pl.pallas_call(
        kernel,
        out_shape=(
            jax.ShapeDtypeStruct((_NUM_CORES, 8, _LANE), jnp.float32),
            jax.ShapeDtypeStruct((_NUM_CORES, 8, _LANE), jnp.float32),
        ),
        grid_spec=pltpu.PrefetchScalarGridSpec(
            num_scalar_prefetch=0,
            grid=(_NUM_CORES, blocks_per_core),
            in_specs=[
                pl.BlockSpec((block_rows, _LANE), in_map),
                pl.BlockSpec((block_rows, _LANE), in_map),
                pl.BlockSpec((block_rows, _LANE), in_map),
            ],
            out_specs=[
                pl.BlockSpec((1, 8, _LANE), lambda c, k: (c, 0, 0)),
                pl.BlockSpec((1, 8, _LANE), lambda c, k: (c, 0, 0)),
            ],
        ),
        compiler_params=pltpu.CompilerParams(
            dimension_semantics=("parallel", "arbitrary"),
        ),
    )(p2, g2, m2)

    abs_sum = jnp.sum(abs_part)
    msk_sum = jnp.sum(msk_part)
    return abs_sum / (msk_sum + 1e-5)


def depth_loss_ref(depth_pred, depth_gt, mask):
    """Pure-JAX reference mirroring the PyTorch forward."""
    depth_pred = depth_pred.astype(jnp.float32)
    depth_gt = depth_gt.astype(jnp.float32)
    mask = mask.astype(jnp.float32)
    mask_d = (depth_gt > 0).astype(jnp.float32)
    mask = mask * mask_d
    mask_sum = jnp.sum(mask) + 1e-5
    depth_error = (depth_pred - depth_gt) * mask
    return jnp.sum(jnp.abs(depth_error)) / mask_sum


if __name__ == "__main__":
    key = jax.random.PRNGKey(0)

    def _check(shape, k):
        k1, k2, k3 = jax.random.split(k, 3)
        pred = jax.random.normal(k1, shape, dtype=jnp.float32)
        gt = jax.random.uniform(k2, shape, minval=-0.5, maxval=2.0,
                                dtype=jnp.float32)
        msk = (jax.random.uniform(k3, shape) > 0.3).astype(jnp.float32)
        out = jax.block_until_ready(depth_loss_pallas(pred, gt, msk))
        ref = depth_loss_ref(pred, gt, msk)
        assert jnp.allclose(out, ref, rtol=1e-4, atol=1e-6), (shape, out, ref)

    keys = jax.random.split(key, 3)
    _check((2, 1, 16, 16), keys[0])      # small NCHW depth maps, lane-divisible
    _check((2, 1, 17, 19), keys[1])      # ragged size -> pad fallback + masking
    _check((1, 1, 2052, 128), keys[2])   # partial final block, both core slots
    print("KERNEL_OK")
</pallas_src>

<mosaic_0001>
module attributes {stable_mosaic.version = 11 : i64} {
  func.func @_depth_loss_kernel(%arg0: i32, %arg1: i32, %arg2: memref<8x128xf32, #tpu.memory_space<vmem>>, %arg3: memref<8x128xf32, #tpu.memory_space<vmem>>, %arg4: memref<8x128xf32, #tpu.memory_space<vmem>>, %arg5: memref<1x8x128xf32, #tpu.memory_space<vmem>>, %arg6: memref<1x8x128xf32, #tpu.memory_space<vmem>>) attributes {dimension_semantics = [#tpu.dimension_semantics<parallel>, #tpu.dimension_semantics<arbitrary>], iteration_bounds = array<i64: 2, 1>, scalar_prefetch = 0 : i64, scratch_operands = 0 : i64, tpu.core_type = #tpu.core_type<tc>, window_params = [{transform_indices = @transform_0, window_bounds = array<i64: 8, 128>}, {transform_indices = @transform_1, window_bounds = array<i64: 8, 128>}, {transform_indices = @transform_2, window_bounds = array<i64: 8, 128>}, {transform_indices = @transform_3, window_bounds = array<i64: 1, 8, 128>}, {transform_indices = @transform_4, window_bounds = array<i64: 1, 8, 128>}]} {
    %c0_i32 = arith.constant 0 : i32
    %0 = arith.cmpi eq, %arg1, %c0_i32 : i32
    %1 = arith.extui %0 : i1 to i32
    %c0_i32_0 = arith.constant 0 : i32
    %2 = arith.cmpi ne, %1, %c0_i32_0 : i32
    scf.if %2 {
      %cst_23 = arith.constant 0.000000e+00 : f32
      %38 = vector.broadcast %cst_23 : f32 to vector<1x8x128xf32>
      %c0_24 = arith.constant 0 : index
      %c0_25 = arith.constant 0 : index
      %c0_26 = arith.constant 0 : index
      %39 = vector.load %arg5[%c0_24, %c0_25, %c0_26] : memref<1x8x128xf32, #tpu.memory_space<vmem>>, vector<1x8x128xf32>
      tpu.vector_store %arg5[%c0_24, %c0_25, %c0_26], %38 {strides = array<i32>} : memref<1x8x128xf32, #tpu.memory_space<vmem>>, vector<1x8x128xf32>,
      %cst_27 = arith.constant 0.000000e+00 : f32
      %40 = vector.broadcast %cst_27 : f32 to vector<1x8x128xf32>
      %c0_28 = arith.constant 0 : index
      %c0_29 = arith.constant 0 : index
      %c0_30 = arith.constant 0 : index
      %41 = vector.load %arg6[%c0_28, %c0_29, %c0_30] : memref<1x8x128xf32, #tpu.memory_space<vmem>>, vector<1x8x128xf32>
      tpu.vector_store %arg6[%c0_28, %c0_29, %c0_30], %40 {strides = array<i32>} : memref<1x8x128xf32, #tpu.memory_space<vmem>>, vector<1x8x128xf32>,
    } else {
    }
    %c0 = arith.constant 0 : index
    %c0_1 = arith.constant 0 : index
    %3 = vector.load %arg2[%c0, %c0_1] : memref<8x128xf32, #tpu.memory_space<vmem>>, vector<8x128xf32>
    %c0_2 = arith.constant 0 : index
    %c0_3 = arith.constant 0 : index
    %4 = vector.load %arg3[%c0_2, %c0_3] : memref<8x128xf32, #tpu.memory_space<vmem>>, vector<8x128xf32>
    %c0_4 = arith.constant 0 : index
    %c0_5 = arith.constant 0 : index
    %5 = vector.load %arg4[%c0_4, %c0_5] : memref<8x128xf32, #tpu.memory_space<vmem>>, vector<8x128xf32>
    %c1_i32 = arith.constant 1 : i32
    %6 = arith.muli %arg0, %c1_i32 : i32
    %7 = arith.addi %6, %arg1 : i32
    %c8_i32 = arith.constant 8 : i32
    %8 = arith.muli %7, %c8_i32 : i32
    %9 = tpu.iota {dimensions = array<i32: 0>} : vector<8x128xi32>
    %10 = vector.broadcast %8 : i32 to vector<8x128xi32>
    %11 = arith.addi %10, %9 : vector<8x128xi32>
    %c8_i32_6 = arith.constant 8 : i32
    %12 = vector.broadcast %c8_i32_6 : i32 to vector<8x128xi32>
    %13 = arith.cmpi slt, %11, %12 : vector<8x128xi32>
    %cst = arith.constant 0.000000e+00 : f32
    %14 = vector.broadcast %cst : f32 to vector<8x128xf32>
    %15 = arith.cmpf ogt, %4, %14 : vector<8x128xf32>
    %16 = arith.extui %15 : vector<8x128xi1> to vector<8x128xi32>
    %17 = arith.sitofp %16 : vector<8x128xi32> to vector<8x128xf32>
    %18 = arith.mulf %5, %17 : vector<8x128xf32>
    %cst_7 = arith.constant 0.000000e+00 : f32
    %19 = vector.broadcast %cst_7 : f32 to vector<8x128xf32>
    %20 = arith.select %13, %18, %19 : vector<8x128xi1>, vector<8x128xf32>
    %21 = arith.subf %3, %4 : vector<8x128xf32>
    %cst_8 = arith.constant 0.000000e+00 : f32
    %22 = vector.broadcast %cst_8 : f32 to vector<8x128xf32>
    %23 = arith.select %13, %21, %22 : vector<8x128xi1>, vector<8x128xf32>
    %24 = arith.mulf %23, %20 : vector<8x128xf32>
    %25 = math.absf %24 : vector<8x128xf32>
    %26 = vector.shape_cast %25 : vector<8x128xf32> to vector<1x8x128xf32>
    %cst_9 = arith.constant dense<0.000000e+00> : vector<8x128xf32>
    %27 = vector.multi_reduction <add>, %26, %cst_9 [0] : vector<1x8x128xf32> to vector<8x128xf32>
    %28 = vector.shape_cast %20 : vector<8x128xf32> to vector<1x8x128xf32>
    %cst_10 = arith.constant dense<0.000000e+00> : vector<8x128xf32>
    %29 = vector.multi_reduction <add>, %28, %cst_10 [0] : vector<1x8x128xf32> to vector<8x128xf32>
    %c0_11 = arith.constant 0 : index
    %c0_12 = arith.constant 0 : index
    %c0_13 = arith.constant 0 : index
    %30 = vector.load %arg5[%c0_11, %c0_12, %c0_13] : memref<1x8x128xf32, #tpu.memory_space<vmem>>, vector<1x8x128xf32>
    %31 = vector.shape_cast %27 : vector<8x128xf32> to vector<1x8x128xf32>
    %32 = arith.addf %30, %31 : vector<1x8x128xf32>
    %c0_14 = arith.constant 0 : index
    %c0_15 = arith.constant 0 : index
    %c0_16 = arith.constant 0 : index
    %33 = vector.load %arg5[%c0_14, %c0_15, %c0_16] : memref<1x8x128xf32, #tpu.memory_space<vmem>>, vector<1x8x128xf32>
    tpu.vector_store %arg5[%c0_14, %c0_15, %c0_16], %32 {strides = array<i32>} : memref<1x8x128xf32, #tpu.memory_space<vmem>>, vector<1x8x128xf32>,
    %c0_17 = arith.constant 0 : index
    %c0_18 = arith.constant 0 : index
    %c0_19 = arith.constant 0 : index
    %34 = vector.load %arg6[%c0_17, %c0_18, %c0_19] : memref<1x8x128xf32, #tpu.memory_space<vmem>>, vector<1x8x128xf32>
    %35 = vector.shape_cast %29 : vector<8x128xf32> to vector<1x8x128xf32>
    %36 = arith.addf %34, %35 : vector<1x8x128xf32>
    %c0_20 = arith.constant 0 : index
    %c0_21 = arith.constant 0 : index
    %c0_22 = arith.constant 0 : index
    %37 = vector.load %arg6[%c0_20, %c0_21, %c0_22] : memref<1x8x128xf32, #tpu.memory_space<vmem>>, vector<1x8x128xf32>
    tpu.vector_store %arg6[%c0_20, %c0_21, %c0_22], %36 {strides = array<i32>} : memref<1x8x128xf32, #tpu.memory_space<vmem>>, vector<1x8x128xf32>,
    return
  }
  func.func @transform_0(%arg0: i32, %arg1: i32) -> (i32, i32) {
    %c1_i32 = arith.constant 1 : i32
    %0 = arith.muli %arg0, %c1_i32 : i32
    %1 = arith.addi %0, %arg1 : i32
    %c0_i32 = arith.constant 0 : i32
    %2 = arith.minsi %1, %c0_i32 : i32
    %c0_i32_0 = arith.constant 0 : i32
    %c0_i32_1 = arith.constant 0 : i32
    return %2, %c0_i32_0 : i32, i32
  }
  func.func @transform_1(%arg0: i32, %arg1: i32) -> (i32, i32) {
    %c1_i32 = arith.constant 1 : i32
    %0 = arith.muli %arg0, %c1_i32 : i32
    %1 = arith.addi %0, %arg1 : i32
    %c0_i32 = arith.constant 0 : i32
    %2 = arith.minsi %1, %c0_i32 : i32
    %c0_i32_0 = arith.constant 0 : i32
    %c0_i32_1 = arith.constant 0 : i32
    return %2, %c0_i32_0 : i32, i32
  }
  func.func @transform_2(%arg0: i32, %arg1: i32) -> (i32, i32) {
    %c1_i32 = arith.constant 1 : i32
    %0 = arith.muli %arg0, %c1_i32 : i32
    %1 = arith.addi %0, %arg1 : i32
    %c0_i32 = arith.constant 0 : i32
    %2 = arith.minsi %1, %c0_i32 : i32
    %c0_i32_0 = arith.constant 0 : i32
    %c0_i32_1 = arith.constant 0 : i32
    return %2, %c0_i32_0 : i32, i32
  }
  func.func @transform_3(%arg0: i32, %arg1: i32) -> (i32, i32, i32) {
    %c0_i32 = arith.constant 0 : i32
    %c0_i32_0 = arith.constant 0 : i32
    %c0_i32_1 = arith.constant 0 : i32
    return %arg0, %c0_i32, %c0_i32_0 : i32, i32, i32
  }
  func.func @transform_4(%arg0: i32, %arg1: i32) -> (i32, i32, i32) {
    %c0_i32 = arith.constant 0 : i32
    %c0_i32_0 = arith.constant 0 : i32
    %c0_i32_1 = arith.constant 0 : i32
    return %arg0, %c0_i32, %c0_i32_0 : i32, i32, i32
  }
}

</mosaic_0001>

<llo_original>
// kernel: tpu_custom_call.1
$region0: #{tpu_custom_call.1}
  #allocation0 [shape = 'u32[]', space=smem, size = 0x4, offset = 0x4, fixed_abs, tag = 'smem constant byte address 0x4 - core index']
  #allocation1 [shape = 'u32[144,128]{1,0:T(1,128)}', space=vmem, size = 0x12000, scoped, tag = 'internal scratch']
  %s0 = inlined_call_operand.hbm [shape: f32[8,128], index: 0, kind: input, shape index: {}]
  %s1 = inlined_call_operand.hbm [shape: f32[8,128], index: 1, kind: input, shape index: {}]
  %s2 = inlined_call_operand.hbm [shape: f32[8,128], index: 2, kind: input, shape index: {}]
  %s3 = inlined_call_operand.hbm [shape: f32[2,8,128], index: 3, kind: output, shape index: {0}]
  %s4 = inlined_call_operand.hbm [shape: f32[2,8,128], index: 4, kind: output, shape index: {1}]
  %5 = xla_tuple %s3, %s4
  %s6 = sld [smem:[#allocation0]]
  $region69: #{tpu_custom_call.1} parent=0
    _
  %s8 = ssub.s32 1, %s6
  %s9 = scalar_select 0, %s8, %s6
  $region1: #{tpu_custom_call.1} parent=0
    #allocation2 [shape = 'u8[8192]{0}', space=vmem, size = 0x2000, scoped, tag = 'input window, operand 0']
    #allocation3 [shape = 's32[2]{0}', space=sflag, size = 0x8, scoped, tag = 'scoped memory for tpu_custom_call.1']
    #allocation4 [shape = 's32[2]{0}', space=sflag, size = 0x8, scoped, tag = 'scoped memory for tpu_custom_call.1']
    #allocation5 [shape = 'u8[8192]{0}', space=vmem, size = 0x2000, scoped, tag = 'input window, operand 1']
    #allocation6 [shape = 's32[2]{0}', space=sflag, size = 0x8, scoped, tag = 'scoped memory for tpu_custom_call.1']
    #allocation7 [shape = 'u8[8192]{0}', space=vmem, size = 0x2000, scoped, tag = 'input window, operand 2']
    #allocation8 [shape = 'u8[8192]{0}', space=vmem, size = 0x2000, scoped, tag = 'output window, operand 0']
    #allocation9 [shape = 'u8[8192]{0}', space=vmem, size = 0x2000, scoped, tag = 'output window, operand 1']
    #allocation10 [shape = 's32[2]{0}', space=sflag, size = 0x8, scoped, tag = 'scoped memory for tpu_custom_call.1']
    %10 = vsyncpa [#allocation3], 0
    %s11 = scalar_lea.sflag [#allocation3], 1
    %12 = vsyncpa %s11, 0
    %13 = vsyncpa [#allocation6], 0
    %s14 = scalar_lea.sflag [#allocation6], 1
    %15 = vsyncpa %s14, 0
    %16 = vsyncpa [#allocation4], 0
    %s17 = scalar_lea.sflag [#allocation4], 1
    %18 = vsyncpa %s17, 0
    %19 = vsyncpa [#allocation10], 0
    %s20 = scalar_lea.sflag [#allocation10], 1
    %21 = vsyncpa %s20, 0
    loop: start=0, step=1, limit=4
    $region2: #{tpu_custom_call.1} parent=1 // loop_pre_header
      _
    $region3: #{tpu_custom_call.1} parent=1 // loop_header
      %s23 = sphi 0, %s27
      %p24 = scmp.ge.s32.totalorder %s23, 4
      %s30 = sphi 0, %s42
      %s31 = sphi 0, %s38
      %s32 = sphi 0, %s30
      %s33 = sphi 0, %s31
      %s34 = sphi 0, %s32
      %s35 = sphi 0, %s33
      %s51 = sphi 0, %s53
      %s54 = sphi 0, %s51
      %s55 = sphi 0, %s54
      %s71 = sphi 0, %s55
      %s83 = sphi 0, %s85
      %s86 = sphi 0, %s83
      %s87 = sphi 0, %s86
      %s103 = sphi 0, %s87
      %s115 = sphi 0, %s117
      %s118 = sphi 0, %s115
      %s119 = sphi 0, %s118
      %s135 = sphi 0, %s119
      %s141 = sphi 0, %s143
      %s144 = sphi 0, %s141
      %s145 = sphi 0, %s144
      %s161 = sphi 0, %s145
      %s167 = sphi 0, %s169
      %s170 = sphi 0, %s167
      %s171 = sphi 0, %s170
      %s187 = sphi 0, %s171
    $region4: #{tpu_custom_call.1} parent=1 // loop_header_branch
      %26 = sbr.rel (%p24) target = $region8
    $region5: #{tpu_custom_call.1} parent=1 // loop_body
      %s28 = ssub.s32 %s23, 1
      %s29 = ssub.s32 %s23, 2
      %s36 = sadd.s32 1, %s31
      %p37 = scmp.ge.s32.totalorder %s36, 1
      %s38 = scalar_select %p37, 0, %s36
      %s39 = sadd.s32 1, %s30
      %s40 = scalar_select %p37, %s39, %s30
      %p41 = scmp.ge.s32.totalorder %s40, 2
      %s42 = scalar_select %p41, 0, %s40
      %s43 = sadd.s32 %s30, %s31
      %p44 = scmp.lt.s32.totalorder %s43, 0
      %s45 = scalar_select %p44, %s43, 0
      %s46 = sadd.s32 %s42, %s38
      %p47 = scmp.lt.s32.totalorder %s46, 0
      %s48 = scalar_select %p47, %s46, 0
      %s49 = ssub.s32 %s45, %s48
      %p50 = scmp.eq.s32.totalorder %s49, 0
      %s52 = sadd.s32 %s51, 1
      %s53 = scalar_select %p50, %s51, %s52
      %p56 = pneg %p50
      %p57 = scmp.eq.s32.totalorder %s23, 1
      %p58 = por %p56, %p57
      %p59 = scmp.ne.s32.totalorder %s51, %s54
      %p60 = scmp.eq.s32.totalorder %s23, 0
      %p61 = por %p59, %p60
      %p62 = scmp.ne.s32.totalorder %s51, %s54
      %p63 = scmp.eq.s32.totalorder %s28, 1
      %p64 = por %p62, %p63
      %p65 = scmp.ne.s32.totalorder %s54, %s55
      %p66 = scmp.eq.s32.totalorder %s28, 0
      %p67 = por %p65, %p66
      %p68 = scmp.ne.s32.totalorder %s54, %s55
      %p69 = scmp.eq.s32.totalorder %s29, 1
      %p70 = por %p68, %p69
      %p72 = scmp.ne.s32.totalorder %s55, %s71
      %p73 = scmp.eq.s32.totalorder %s29, 0
      %p74 = por %p72, %p73
      %s75 = sadd.s32 %s30, %s31
      %p76 = scmp.lt.s32.totalorder %s75, 0
      %s77 = scalar_select %p76, %s75, 0
      %s78 = sadd.s32 %s42, %s38
      %p79 = scmp.lt.s32.totalorder %s78, 0
      %s80 = scalar_select %p79, %s78, 0
      %s81 = ssub.s32 %s77, %s80
      %p82 = scmp.eq.s32.totalorder %s81, 0
      %s84 = sadd.s32 %s83, 1
      %s85 = scalar_select %p82, %s83, %s84
      %p88 = pneg %p82
      %p89 = scmp.eq.s32.totalorder %s23, 1
      %p90 = por %p88, %p89
      %p91 = scmp.ne.s32.totalorder %s83, %s86
      %p92 = scmp.eq.s32.totalorder %s23, 0
      %p93 = por %p91, %p92
      %p94 = scmp.ne.s32.totalorder %s83, %s86
      %p95 = scmp.eq.s32.totalorder %s28, 1
      %p96 = por %p94, %p95
      %p97 = scmp.ne.s32.totalorder %s86, %s87
      %p98 = scmp.eq.s32.totalorder %s28, 0
      %p99 = por %p97, %p98
      %p100 = scmp.ne.s32.totalorder %s86, %s87
      %p101 = scmp.eq.s32.totalorder %s29, 1
      %p102 = por %p100, %p101
      %p104 = scmp.ne.s32.totalorder %s87, %s103
      %p105 = scmp.eq.s32.totalorder %s29, 0
      %p106 = por %p104, %p105
      %s107 = sadd.s32 %s30, %s31
      %p108 = scmp.lt.s32.totalorder %s107, 0
      %s109 = scalar_select %p108, %s107, 0
      %s110 = sadd.s32 %s42, %s38
      %p111 = scmp.lt.s32.totalorder %s110, 0
      %s112 = scalar_select %p111, %s110, 0
      %s113 = ssub.s32 %s109, %s112
      %p114 = scmp.eq.s32.totalorder %s113, 0
      %s116 = sadd.s32 %s115, 1
      %s117 = scalar_select %p114, %s115, %s116
      %p120 = pneg %p114
      %p121 = scmp.eq.s32.totalorder %s23, 1
      %p122 = por %p120, %p121
      %p123 = scmp.ne.s32.totalorder %s115, %s118
      %p124 = scmp.eq.s32.totalorder %s23, 0
      %p125 = por %p123, %p124
      %p126 = scmp.ne.s32.totalorder %s115, %s118
      %p127 = scmp.eq.s32.totalorder %s28, 1
      %p128 = por %p126, %p127
      %p129 = scmp.ne.s32.totalorder %s118, %s119
      %p130 = scmp.eq.s32.totalorder %s28, 0
      %p131 = por %p129, %p130
      %p132 = scmp.ne.s32.totalorder %s118, %s119
      %p133 = scmp.eq.s32.totalorder %s29, 1
      %p134 = por %p132, %p133
      %p136 = scmp.ne.s32.totalorder %s119, %s135
      %p137 = scmp.eq.s32.totalorder %s29, 0
      %p138 = por %p136, %p137
      %s139 = ssub.s32 %s30, %s42
      %p140 = scmp.eq.s32.totalorder %s139, 0
      %s142 = sadd.s32 %s141, 1
      %s143 = scalar_select %p140, %s141, %s142
      %p146 = pneg %p140
      %p147 = scmp.eq.s32.totalorder %s23, 1
      %p148 = por %p146, %p147
      %p149 = scmp.ne.s32.totalorder %s141, %s144
      %p150 = scmp.eq.s32.totalorder %s23, 0
      %p151 = por %p149, %p150
      %p152 = scmp.ne.s32.totalorder %s141, %s144
      %p153 = scmp.eq.s32.totalorder %s28, 1
      %p154 = por %p152, %p153
      %p155 = scmp.ne.s32.totalorder %s144, %s145
      %p156 = scmp.eq.s32.totalorder %s28, 0
      %p157 = por %p155, %p156
      %p158 = scmp.ne.s32.totalorder %s144, %s145
      %p159 = scmp.eq.s32.totalorder %s29, 1
      %p160 = por %p158, %p159
      %p162 = scmp.ne.s32.totalorder %s145, %s161
      %p163 = scmp.eq.s32.totalorder %s29, 0
      %p164 = por %p162, %p163
      %s165 = ssub.s32 %s30, %s42
      %p166 = scmp.eq.s32.totalorder %s165, 0
      %s168 = sadd.s32 %s167, 1
      %s169 = scalar_select %p166, %s167, %s168
      %p172 = pneg %p166
      %p173 = scmp.eq.s32.totalorder %s23, 1
      %p174 = por %p172, %p173
      %p175 = scmp.ne.s32.totalorder %s167, %s170
      %p176 = scmp.eq.s32.totalorder %s23, 0
      %p177 = por %p175, %p176
      %p178 = scmp.ne.s32.totalorder %s167, %s170
      %p179 = scmp.eq.s32.totalorder %s28, 1
      %p180 = por %p178, %p179
      %p181 = scmp.ne.s32.totalorder %s170, %s171
      %p182 = scmp.eq.s32.totalorder %s28, 0
      %p183 = por %p181, %p182
      %p184 = scmp.ne.s32.totalorder %s170, %s171
      %p185 = scmp.eq.s32.totalorder %s29, 1
      %p186 = por %p184, %p185
      %p188 = scmp.ne.s32.totalorder %s171, %s187
      %p189 = scmp.eq.s32.totalorder %s29, 0
      %p190 = por %p188, %p189
      %p191 = scmp.le.s32.totalorder 1, %s23
      %p192 = scmp.lt.s32.totalorder %s23, 3
      %p193 = pnand %p191, %p192
      %p194 = pneg %p193
      // Predicated region
      $region9: #{tpu_custom_call.1} parent=5 // pred_check
        _
      $region10: #{tpu_custom_call.1} parent=5 // pred_check_branch
        %196 = sbr.rel (%p193) target = $region12
      $region11: #{tpu_custom_call.1} parent=5 // pred_region
        %s197 = ssub.s32 %s23, 1
      $region12: #{tpu_custom_call.1} parent=5 // pred_fallthru
        _
      %p198 = scmp.lt.s32.totalorder %s23, 2
      // Predicated region
      $region13: #{tpu_custom_call.1} parent=5 // pred_check
        %p199 = pneg %p198
      $region14: #{tpu_custom_call.1} parent=5 // pred_check_branch
        %201 = sbr.rel (%p199) target = $region16
      $region15: #{tpu_custom_call.1} parent=5 // pred_region
        // Predicated region
        $region17: #{tpu_custom_call.1} parent=15 // pred_check
          %p202 = pneg %p61
        $region18: #{tpu_custom_call.1} parent=15 // pred_check_branch
          %204 = sbr.rel (%p202) target = $region20
        $region19: #{tpu_custom_call.1} parent=15 // pred_region
          %s205 = sand.u32 %s51, 1
          %s206 = scalar_lea.sflag [#allocation3], %s205
          %s207 = sand.u32 %s51, 1
          %s208 = smul.addr %s207, 8
          %s209 = scalar_lea.vmem [#allocation2], %s208
          %s210 = sadd.s32 %s30, %s31
          %p211 = scmp.lt.s32.totalorder %s210, 0
          %s212 = scalar_select %p211, %s210, 0
          %s214 = ssub.s32 128, 128
          %215 = vsyncadd %s206, %s214
          %s216 = smul.addr %s212, 128
          %s217 = scalar_lea.hbm %s0, %s216
          %s219 = sshll.u32 %s209, 4
          %s220 = int_to_ptr.vmem [resolvable:$true] %s219
          %222 = dma.hbm_to_vmem [thread:$0]  %s217, 128, %s220, %s206
        $region20: #{tpu_custom_call.1} parent=15 // pred_fallthru
          _
        // Predicated region
        $region21: #{tpu_custom_call.1} parent=15 // pred_check
          %p223 = pneg %p93
        $region22: #{tpu_custom_call.1} parent=15 // pred_check_branch
          %225 = sbr.rel (%p223) target = $region24
        $region23: #{tpu_custom_call.1} parent=15 // pred_region
          %s226 = sand.u32 %s23, 1
          %s227 = scalar_lea.sflag [#allocation6], %s226
          %s228 = sand.u32 %s83, 1
          %s229 = smul.addr %s228, 8
          %s230 = scalar_lea.vmem [#allocation5], %s229
          %s231 = sadd.s32 %s30, %s31
          %p232 = scmp.lt.s32.totalorder %s231, 0
          %s233 = scalar_select %p232, %s231, 0
          %s235 = ssub.s32 128, 128
          %236 = vsyncadd %s227, %s235
          %s237 = smul.addr %s233, 128
          %s238 = scalar_lea.hbm %s1, %s237
          %s240 = sshll.u32 %s230, 4
          %s241 = int_to_ptr.vmem [resolvable:$true] %s240
          %243 = dma.hbm_to_vmem [thread:$0]  %s238, 128, %s241, %s227
        $region24: #{tpu_custom_call.1} parent=15 // pred_fallthru
          _
        // Predicated region
        $region25: #{tpu_custom_call.1} parent=15 // pred_check
          %p244 = pneg %p125
        $region26: #{tpu_custom_call.1} parent=15 // pred_check_branch
          %246 = sbr.rel (%p244) target = $region28
        $region27: #{tpu_custom_call.1} parent=15 // pred_region
          %s247 = sand.u32 %s23, 1
          %s248 = scalar_lea.sflag [#allocation6], %s247
          %s249 = sand.u32 %s115, 1
          %s250 = smul.addr %s249, 8
          %s251 = scalar_lea.vmem [#allocation7], %s250
          %s252 = sadd.s32 %s30, %s31
          %p253 = scmp.lt.s32.totalorder %s252, 0
          %s254 = scalar_select %p253, %s252, 0
          %s256 = ssub.s32 128, 128
          %257 = vsyncadd %s248, %s256
          %s258 = smul.addr %s254, 128
          %s259 = scalar_lea.hbm %s2, %s258
          %s261 = sshll.u32 %s251, 4
          %s262 = int_to_ptr.vmem [resolvable:$true] %s261
          %264 = dma.hbm_to_vmem [thread:$0]  %s259, 128, %s262, %s248
        $region28: #{tpu_custom_call.1} parent=15 // pred_fallthru
          _
      $region16: #{tpu_custom_call.1} parent=5 // pred_fallthru
        _
      %p265 = scmp.le.s32.totalorder 1, %s23
      %p266 = scmp.lt.s32.totalorder %s23, 3
      %p267 = pnand %p265, %p266
      %p268 = pneg %p267
      // Predicated region
      $region29: #{tpu_custom_call.1} parent=5 // pred_check
        _
      $region30: #{tpu_custom_call.1} parent=5 // pred_check_branch
        %270 = sbr.rel (%p267) target = $region32
      $region31: #{tpu_custom_call.1} parent=5 // pred_region
        %s271 = ssub.s32 %s23, 1
        %s272 = sand.u32 %s54, 1
        %s273 = scalar_lea.sflag [#allocation3], %s272
        %s274 = sand.u32 %s54, 1
        %s275 = smul.addr %s274, 8
        %s276 = scalar_lea.vmem [#allocation2], %s275
        // Predicated region
        $region33: #{tpu_custom_call.1} parent=31 // pred_check
          %p277 = pneg %p67
        $region34: #{tpu_custom_call.1} parent=31 // pred_check_branch
          %279 = sbr.rel (%p277) target = $region36
        $region35: #{tpu_custom_call.1} parent=31 // pred_region
          %280 = dma.done %s273, 128
        $region36: #{tpu_custom_call.1} parent=31 // pred_fallthru
          _
        %s281 = sand.u32 %s28, 1
        %s282 = scalar_lea.sflag [#allocation6], %s281
        %s283 = sand.u32 %s86, 1
        %s284 = smul.addr %s283, 8
        %s285 = scalar_lea.vmem [#allocation5], %s284
        // Predicated region
        $region37: #{tpu_custom_call.1} parent=31 // pred_check
          %p286 = pneg %p99
        $region38: #{tpu_custom_call.1} parent=31 // pred_check_branch
          %288 = sbr.rel (%p286) target = $region40
        $region39: #{tpu_custom_call.1} parent=31 // pred_region
          %289 = dma.done %s282, 128
        $region40: #{tpu_custom_call.1} parent=31 // pred_fallthru
          _
        %s290 = sand.u32 %s28, 1
        %s291 = scalar_lea.sflag [#allocation6], %s290
        %s292 = sand.u32 %s118, 1
        %s293 = smul.addr %s292, 8
        %s294 = scalar_lea.vmem [#allocation7], %s293
        // Predicated region
        $region41: #{tpu_custom_call.1} parent=31 // pred_check
          %p295 = pneg %p131
        $region42: #{tpu_custom_call.1} parent=31 // pred_check_branch
          %297 = sbr.rel (%p295) target = $region44
        $region43: #{tpu_custom_call.1} parent=31 // pred_region
          %298 = dma.done %s291, 128
        $region44: #{tpu_custom_call.1} parent=31 // pred_fallthru
          _
        %s299 = sand.u32 %s54, 1
        %s300 = scalar_lea.sflag [#allocation3], %s299
        %s301 = sand.u32 %s54, 1
        %s302 = smul.addr %s301, 8
        %s303 = scalar_lea.vmem [#allocation2], %s302
        %p304 = pneg %p67
        %p305 = pneg %p64
        %s306 = sand.u32 %s28, 1
        %s307 = scalar_lea.sflag [#allocation6], %s306
        %s308 = sand.u32 %s86, 1
        %s309 = smul.addr %s308, 8
        %s310 = scalar_lea.vmem [#allocation5], %s309
        %p311 = pneg %p99
        %p312 = pneg %p96
        %s313 = sand.u32 %s28, 1
        %s314 = scalar_lea.sflag [#allocation6], %s313
        %s315 = sand.u32 %s118, 1
        %s316 = smul.addr %s315, 8
        %s317 = scalar_lea.vmem [#allocation7], %s316
        %p318 = pneg %p131
        %p319 = pneg %p128
        %p320 = pneg %p157
        %p321 = pneg %p154
        %s322 = sand.u32 %s144, 1
        %s323 = scalar_lea.sflag [#allocation4], %s322
        %s324 = sand.u32 %s144, 1
        %s325 = smul.addr %s324, 8
        %s326 = scalar_lea.vmem [#allocation8], %s325
        %p327 = pneg %p183
        %p328 = pneg %p180
        %s329 = sand.u32 %s170, 1
        %s330 = scalar_lea.sflag [#allocation10], %s329
        %s331 = sand.u32 %s170, 1
        %s332 = smul.addr %s331, 8
        %s333 = scalar_lea.vmem [#allocation9], %s332
        %s334 = sadd.s32 %s32, %s33
        %p335 = scmp.lt.s32.totalorder %s334, 0
        %s336 = scalar_select %p335, %s334, 0
        %s337 = sadd.s32 %s32, %s33
        %p338 = scmp.lt.s32.totalorder %s337, 0
        %s339 = scalar_select %p338, %s337, 0
        %s340 = sadd.s32 %s32, %s33
        %p341 = scmp.lt.s32.totalorder %s340, 0
        %s342 = scalar_select %p341, %s340, 0
        %p343 = scmp.eq.s32.totalorder %s33, 0
        // Predicated region
        $region45: #{tpu_custom_call.1} parent=31 // pred_check
          %p344 = pneg %p343
        $region46: #{tpu_custom_call.1} parent=31 // pred_check_branch
          %346 = sbr.rel (%p344) target = $region48
        $region47: #{tpu_custom_call.1} parent=31 // pred_region
          %347 = vst [vmem:[%s326] sm:$0xff] 0.0
          %348 = vst [vmem:[%s333] sm:$0xff] 0.0
        $region48: #{tpu_custom_call.1} parent=31 // pred_fallthru
          _
        %v349 = vld [vmem:[%s276] sm:$0xff]
        %v350 = vld [vmem:[%s285] sm:$0xff]
        %v351 = vld [vmem:[%s294] sm:$0xff]
        %s352 = sadd.s32 %s32, %s33
        %s353 = smul.u32 %s352, 8
        %v354 = vlaneseq
        %v355 = vshrl.u32 %v354, 7
        %v356 = vstv %s353
        %v357 = vadd.s32 %v356, %v355
        %vm358 = vcmp.lt.s32.totalorder %v357, 8
        %vm359 = vcmp.gt.f32.partialorder %v350, 0.0
        %v360 = vsel %vm359, 1, 0
        %v361 = vcvt.s32.f32 %v360
        %v362 = vmul.f32 %v351, %v361
        %v363 = vsel %vm358, %v362, 0.0
        %v364 = vsub.f32 %v349, %v350
        %v365 = vsel %vm358, %v364, 0.0
        %v366 = vmul.f32 %v365, %v363
        %v367 = vand.u32 2147483647, %v366
        %v368 = vadd.f32 %v367, 0.0
        %v369 = vadd.f32 %v363, 0.0
        %v370 = vld [vmem:[%s326] sm:$0xff]
        %v371 = vadd.f32 %v370, %v368
        %372 = vst [vmem:[%s326] sm:$0xff] %v371
        %v373 = vld [vmem:[%s333] sm:$0xff]
        %v374 = vadd.f32 %v373, %v369
        %375 = vst [vmem:[%s333] sm:$0xff] %v374
        %s376 = sand.u32 %s144, 1
        %s377 = scalar_lea.sflag [#allocation4], %s376
        %s378 = sand.u32 %s144, 1
        %s379 = smul.addr %s378, 8
        %s380 = scalar_lea.vmem [#allocation8], %s379
        %s381 = sand.u32 %s170, 1
        %s382 = scalar_lea.sflag [#allocation10], %s381
        %s383 = sand.u32 %s170, 1
        %s384 = smul.addr %s383, 8
        %s385 = scalar_lea.vmem [#allocation9], %s384
        // Predicated region
        $region49: #{tpu_custom_call.1} parent=31 // pred_check
          %p386 = pneg %p154
        $region50: #{tpu_custom_call.1} parent=31 // pred_check_branch
          %388 = sbr.rel (%p386) target = $region52
        $region51: #{tpu_custom_call.1} parent=31 // pred_region
          %s390 = ssub.s32 128, 128
          %391 = vsyncadd %s377, %s390
          %s392 = smul.addr %s32, 128
          %s393 = scalar_lea.hbm %s3, %s392
          %s395 = sshll.u32 %s380, 4
          %s396 = int_to_ptr.vmem [resolvable:$true] %s395
          %398 = dma.vmem_to_hbm [thread:$0]  %s396, 128, %s393, %s377
        $region52: #{tpu_custom_call.1} parent=31 // pred_fallthru
          _
        // Predicated region
        $region53: #{tpu_custom_call.1} parent=31 // pred_check
          %p399 = pneg %p180
        $region54: #{tpu_custom_call.1} parent=31 // pred_check_branch
          %401 = sbr.rel (%p399) target = $region56
        $region55: #{tpu_custom_call.1} parent=31 // pred_region
          %s403 = ssub.s32 128, 128
          %404 = vsyncadd %s382, %s403
          %s405 = smul.addr %s32, 128
          %s406 = scalar_lea.hbm %s4, %s405
          %s408 = sshll.u32 %s385, 4
          %s409 = int_to_ptr.vmem [resolvable:$true] %s408
          %411 = dma.vmem_to_hbm [thread:$0]  %s409, 128, %s406, %s382
        $region56: #{tpu_custom_call.1} parent=31 // pred_fallthru
          _
      $region32: #{tpu_custom_call.1} parent=5 // pred_fallthru
        _
      %p412 = scmp.le.s32.totalorder 2, %s23
      // Predicated region
      $region57: #{tpu_custom_call.1} parent=5 // pred_check
        %p413 = pneg %p412
      $region58: #{tpu_custom_call.1} parent=5 // pred_check_branch
        %415 = sbr.rel (%p413) target = $region60
      $region59: #{tpu_custom_call.1} parent=5 // pred_region
        %s416 = ssub.s32 %s23, 2
        // Predicated region
        $region61: #{tpu_custom_call.1} parent=59 // pred_check
          %p417 = pneg %p160
        $region62: #{tpu_custom_call.1} parent=59 // pred_check_branch
          %419 = sbr.rel (%p417) target = $region64
        $region63: #{tpu_custom_call.1} parent=59 // pred_region
          %s420 = sand.u32 %s145, 1
          %s421 = scalar_lea.sflag [#allocation4], %s420
          %s422 = sand.u32 %s145, 1
          %s423 = smul.addr %s422, 8
          %s424 = scalar_lea.vmem [#allocation8], %s423
          %425 = dma.done %s421, 128
        $region64: #{tpu_custom_call.1} parent=59 // pred_fallthru
          _
        // Predicated region
        $region65: #{tpu_custom_call.1} parent=59 // pred_check
          %p426 = pneg %p186
        $region66: #{tpu_custom_call.1} parent=59 // pred_check_branch
          %428 = sbr.rel (%p426) target = $region68
        $region67: #{tpu_custom_call.1} parent=59 // pred_region
          %s429 = sand.u32 %s171, 1
          %s430 = scalar_lea.sflag [#allocation10], %s429
          %s431 = sand.u32 %s171, 1
          %s432 = smul.addr %s431, 8
          %s433 = scalar_lea.vmem [#allocation9], %s432
          %434 = dma.done %s430, 128
        $region68: #{tpu_custom_call.1} parent=59 // pred_fallthru
          _
      $region60: #{tpu_custom_call.1} parent=5 // pred_fallthru
        _
    $region6: #{tpu_custom_call.1} parent=1 // loop_footer
      %s27 = sadd.s32 1, %s23
    $region7: #{tpu_custom_call.1} parent=1 // loop_footer_branch
      %22 = sbr.rel target = $region3
    $region8: #{tpu_custom_call.1} parent=1 // loop_exit
      _
    %435 = vsyncpa [#allocation3], 1
    %s436 = scalar_lea.sflag [#allocation3], 1
    %437 = vsyncpa %s436, 1
    %438 = vsyncpa [#allocation6], 1
    %s439 = scalar_lea.sflag [#allocation6], 1
    %440 = vsyncpa %s439, 1
    %441 = vsyncpa [#allocation4], 1
    %s442 = scalar_lea.sflag [#allocation4], 1
    %443 = vsyncpa %s442, 1
    %444 = vsyncpa [#allocation10], 1
    %s445 = scalar_lea.sflag [#allocation10], 1
    %446 = vsyncpa %s445, 1

</llo_original>
